<compile_context>
chip_gen: v7x
topology: tpu7x:2x2x1
jax: 0.10.0
libtpu: 0.0.40
codegen_flags: <defaults>
</compile_context>

<pallas_src>
from functools import partial

import jax
import jax.numpy as jnp
from jax import lax
from jax.experimental import pallas as pl
from jax.experimental.pallas import tpu as pltpu

BATCH = 2
SEQ = 16
HIDDEN = 128               # config.hidden_size (one vreg lane width)
MAX_INTI_POS = 64          # config.max_inti_pos_index
MAX_HOP_DIS = 32           # config.max_hop_dis_index
LAYER_NORM_EPS = 1e-12     # config.layer_norm_eps
ROW_TILE = 512             # row tile used only when B*S is large


# --------------------------------------------------------------------------
# One-time (outside jit) parameter packing.
# --------------------------------------------------------------------------
def pack_edge_encoding_params(pos_table, hop_table, ln_gamma, ln_beta):
    """Concatenate the two embedding tables and stack gamma/beta. Call once."""
    table = jnp.concatenate([pos_table, hop_table], axis=0).astype(jnp.float32)  # (Vp+Vh, H)
    ln = jnp.stack([ln_gamma, ln_beta], axis=0).astype(jnp.float32)              # (2, H)
    return table, ln


# --------------------------------------------------------------------------
# Pallas kernel: full EdgeEncoding forward on one (R, H) slab of tokens.
# Works for both the grid-less call (full arrays) and the row-tiled grid.
# --------------------------------------------------------------------------
def _make_kernel(pos_vocab):
    def kernel(pos_ids_ref, hop_ids_ref, time_ids_ref, table_ref, ln_ref, out_ref):
        r = out_ref.shape[0]
        k = table_ref.shape[0]                           # Vp + Vh

        pos_ids = pos_ids_ref[...]                       # (R, 1) int32
        hop_ids = hop_ids_ref[...] + pos_vocab           # offset into packed table
        time_ids = time_ids_ref[...] + pos_vocab

        # Single combined one-hot: all three lookups served by ONE MXU matmul.
        iota = lax.broadcasted_iota(jnp.int32, (r, k), 1)
        onehot = ((iota == pos_ids).astype(jnp.float32)
                  + (iota == hop_ids).astype(jnp.float32)
                  + (iota == time_ids).astype(jnp.float32))          # (R, K)

        # HIGHEST precision -> multi-pass bf16 decomposition is exact for
        # one-hot values {0,1,2}, i.e. bit-faithful to an f32 table gather.
        emb = jnp.dot(onehot, table_ref[...],
                      preferred_element_type=jnp.float32,
                      precision=lax.Precision.HIGHEST)               # (R, H)

        # LayerNorm over the hidden (last) dim.
        mean = jnp.mean(emb, axis=-1, keepdims=True)
        xc = emb - mean
        var = jnp.mean(xc * xc, axis=-1, keepdims=True)
        inv = lax.rsqrt(var + LAYER_NORM_EPS)
        gamma = ln_ref[0:1, :]                           # (1, H)
        beta = ln_ref[1:2, :]                            # (1, H)
        out_ref[...] = xc * inv * gamma + beta
        # TODO(synk): nn.Dropout is inference-mode identity here; training-mode
        # dropout would use pltpu.prng_seed / pltpu.prng_random_bits.
    return kernel


# --------------------------------------------------------------------------
# Wrapper: single fused pallas_call; row-tiled parallel grid only when R is big.
# --------------------------------------------------------------------------
@partial(jax.jit, static_argnames=("pos_vocab",))
def edge_encoding(init_pos_ids, hop_dis_ids, time_dis_ids, table, ln, pos_vocab):
    b, s = init_pos_ids.shape
    r = b * s
    k, h = table.shape

    # Metadata-only reshapes; no per-call packing ops.
    pos = init_pos_ids.reshape(r, 1).astype(jnp.int32)
    hop = hop_dis_ids.reshape(r, 1).astype(jnp.int32)
    tim = time_dis_ids.reshape(r, 1).astype(jnp.int32)

    kernel = _make_kernel(pos_vocab)
    cost = pl.CostEstimate(
        flops=2 * r * k * h + 10 * r * h,
        transcendentals=r,                               # one rsqrt per row
        bytes_accessed=3 * r * 4 + k * h * 4 + 2 * h * 4 + r * h * 4,
    )
    out_shape = jax.ShapeDtypeStruct((r, h), jnp.float32)

    if r >= 2 * ROW_TILE and r % ROW_TILE == 0:
        # Row-tiled "parallel" grid: shards rows across TensorCores (v7x has 2);
        # table and LN params stay VMEM-resident via constant index_maps.
        out = pl.pallas_call(
            kernel,
            out_shape=out_shape,
            grid=(r // ROW_TILE,),
            in_specs=[
                pl.BlockSpec((ROW_TILE, 1), lambda i: (i, 0)),
                pl.BlockSpec((ROW_TILE, 1), lambda i: (i, 0)),
                pl.BlockSpec((ROW_TILE, 1), lambda i: (i, 0)),
                pl.BlockSpec((k, h), lambda i: (0, 0)),   # resident table
                pl.BlockSpec((2, h), lambda i: (0, 0)),   # resident gamma/beta
            ],
            out_specs=pl.BlockSpec((ROW_TILE, h), lambda i: (i, 0)),
            compiler_params=pltpu.CompilerParams(
                dimension_semantics=("parallel",)),
            cost_estimate=cost,
        )(pos, hop, tim, table, ln)
    else:
        # Tiny problem (R=32 here): grid-less, everything (~65 KiB) in VMEM.
        vmem = pl.BlockSpec(memory_space=pltpu.MemorySpace.VMEM)
        out = pl.pallas_call(
            kernel,
            out_shape=out_shape,
            in_specs=[vmem] * 5,
            out_specs=vmem,
            cost_estimate=cost,
        )(pos, hop, tim, table, ln)

    return out.reshape(b, s, h)


# --------------------------------------------------------------------------
# Pure-JAX reference (same math, no Pallas) for a correctness check.
# --------------------------------------------------------------------------
def edge_encoding_ref(init_pos_ids, hop_dis_ids, time_dis_ids,
                      pos_table, hop_table, ln_gamma, ln_beta):
    pos_e = pos_table[init_pos_ids]
    hop_e = hop_table[hop_dis_ids]
    time_e = hop_table[time_dis_ids]          # hop table reused, as in the spec
    emb = pos_e + hop_e + time_e
    mean = jnp.mean(emb, axis=-1, keepdims=True)
    var = jnp.mean((emb - mean) ** 2, axis=-1, keepdims=True)
    return (emb - mean) * lax.rsqrt(var + LAYER_NORM_EPS) * ln_gamma + ln_beta


if __name__ == "__main__":
    key = jax.random.PRNGKey(0)
    k1, k2, k3, k4, k5, k6, k7 = jax.random.split(key, 7)

    init_pos_ids = jax.random.randint(k1, (BATCH, SEQ), 0, MAX_INTI_POS, dtype=jnp.int32)
    hop_dis_ids = jax.random.randint(k2, (BATCH, SEQ), 0, MAX_HOP_DIS, dtype=jnp.int32)
    time_dis_ids = jax.random.randint(k3, (BATCH, SEQ), 0, MAX_HOP_DIS, dtype=jnp.int32)

    pos_table = (0.02 * jax.random.normal(k4, (MAX_INTI_POS, HIDDEN))).astype(jnp.float32)
    hop_table = (0.02 * jax.random.normal(k5, (MAX_HOP_DIS, HIDDEN))).astype(jnp.float32)
    # NOTE: self.time_dis_embeddings exists in the module but is unused on the
    # forward path (the spec's forward reuses hop_dis_embeddings), so its table
    # is intentionally not materialized.
    ln_gamma = (1.0 + 0.1 * jax.random.normal(k6, (HIDDEN,))).astype(jnp.float32)
    ln_beta = (0.1 * jax.random.normal(k7, (HIDDEN,))).astype(jnp.float32)

    # One-time packing (outside jit / outside the hot path).
    table, ln = pack_edge_encoding_params(pos_table, hop_table, ln_gamma, ln_beta)

    out = edge_encoding(init_pos_ids, hop_dis_ids, time_dis_ids,
                        table, ln, MAX_INTI_POS)
    out = jax.block_until_ready(out)

    ref = edge_encoding_ref(init_pos_ids, hop_dis_ids, time_dis_ids,
                            pos_table, hop_table, ln_gamma, ln_beta)
    assert out.shape == (BATCH, SEQ, HIDDEN)
    assert jnp.allclose(out, ref, atol=1e-5, rtol=1e-5), "mismatch vs. reference"

    print("KERNEL_OK")
</pallas_src>

<mosaic_0001>
module attributes {stable_mosaic.version = 11 : i64} {
  func.func @kernel(%arg0: memref<32x1xi32, #tpu.memory_space<vmem>>, %arg1: memref<32x1xi32, #tpu.memory_space<vmem>>, %arg2: memref<32x1xi32, #tpu.memory_space<vmem>>, %arg3: memref<96x128xf32, #tpu.memory_space<vmem>>, %arg4: memref<2x128xf32, #tpu.memory_space<vmem>>, %arg5: memref<32x128xf32, #tpu.memory_space<vmem>>) attributes {dimension_semantics = [], scalar_prefetch = 0 : i64, scratch_operands = 0 : i64, tpu.core_type = #tpu.core_type<tc>} {
    %c0 = arith.constant 0 : index
    %c0_0 = arith.constant 0 : index
    %0 = vector.load %arg0[%c0, %c0_0] : memref<32x1xi32, #tpu.memory_space<vmem>>, vector<32x1xi32>
    %c0_1 = arith.constant 0 : index
    %c0_2 = arith.constant 0 : index
    %1 = vector.load %arg1[%c0_1, %c0_2] : memref<32x1xi32, #tpu.memory_space<vmem>>, vector<32x1xi32>
    %c64_i32 = arith.constant 64 : i32
    %2 = vector.broadcast %c64_i32 : i32 to vector<32x1xi32>
    %3 = arith.addi %1, %2 : vector<32x1xi32>
    %c0_3 = arith.constant 0 : index
    %c0_4 = arith.constant 0 : index
    %4 = vector.load %arg2[%c0_3, %c0_4] : memref<32x1xi32, #tpu.memory_space<vmem>>, vector<32x1xi32>
    %c64_i32_5 = arith.constant 64 : i32
    %5 = vector.broadcast %c64_i32_5 : i32 to vector<32x1xi32>
    %6 = arith.addi %4, %5 : vector<32x1xi32>
    %7 = tpu.iota {dimensions = array<i32: 1>} : vector<32x96xi32>
    %8 = vector.broadcast %0 : vector<32x1xi32> to vector<32x96xi32>
    %9 = arith.cmpi eq, %7, %8 : vector<32x96xi32>
    %10 = arith.extui %9 : vector<32x96xi1> to vector<32x96xi32>
    %11 = arith.sitofp %10 : vector<32x96xi32> to vector<32x96xf32>
    %12 = vector.broadcast %3 : vector<32x1xi32> to vector<32x96xi32>
    %13 = arith.cmpi eq, %7, %12 : vector<32x96xi32>
    %14 = arith.extui %13 : vector<32x96xi1> to vector<32x96xi32>
    %15 = arith.sitofp %14 : vector<32x96xi32> to vector<32x96xf32>
    %16 = arith.addf %11, %15 : vector<32x96xf32>
    %17 = vector.broadcast %6 : vector<32x1xi32> to vector<32x96xi32>
    %18 = arith.cmpi eq, %7, %17 : vector<32x96xi32>
    %19 = arith.extui %18 : vector<32x96xi1> to vector<32x96xi32>
    %20 = arith.sitofp %19 : vector<32x96xi32> to vector<32x96xf32>
    %21 = arith.addf %16, %20 : vector<32x96xf32>
    %c0_6 = arith.constant 0 : index
    %c0_7 = arith.constant 0 : index
    %22 = vector.load %arg3[%c0_6, %c0_7] : memref<96x128xf32, #tpu.memory_space<vmem>>, vector<96x128xf32>
    %cst = arith.constant dense<0.000000e+00> : vector<32x128xf32>
    %23 = tpu.matmul %21, %22, %cst {dimension_numbers = #tpu.dot_dimension_numbers<[1], [0], [0], [1], [0, 0, 1, 1], [], []>, precision = #tpu.contract_precision<fp32>} : vector<32x96xf32>, vector<96x128xf32>, vector<32x128xf32> -> vector<32x128xf32>
    %cst_8 = arith.constant dense<0.000000e+00> : vector<32xf32>
    %24 = vector.multi_reduction <add>, %23, %cst_8 [1] : vector<32x128xf32> to vector<32xf32>
    %25 = vector.shape_cast %24 : vector<32xf32> to vector<32x1xf32>
    %cst_9 = arith.constant 1.280000e+02 : f32
    %26 = vector.broadcast %cst_9 : f32 to vector<32x1xf32>
    %27 = arith.divf %25, %26 : vector<32x1xf32>
    %28 = vector.broadcast %27 : vector<32x1xf32> to vector<32x128xf32>
    %29 = arith.subf %23, %28 : vector<32x128xf32>
    %30 = arith.mulf %29, %29 : vector<32x128xf32>
    %cst_10 = arith.constant dense<0.000000e+00> : vector<32xf32>
    %31 = vector.multi_reduction <add>, %30, %cst_10 [1] : vector<32x128xf32> to vector<32xf32>
    %32 = vector.shape_cast %31 : vector<32xf32> to vector<32x1xf32>
    %cst_11 = arith.constant 1.280000e+02 : f32
    %33 = vector.broadcast %cst_11 : f32 to vector<32x1xf32>
    %34 = arith.divf %32, %33 : vector<32x1xf32>
    %cst_12 = arith.constant 9.99999996E-13 : f32
    %35 = vector.broadcast %cst_12 : f32 to vector<32x1xf32>
    %36 = arith.addf %34, %35 : vector<32x1xf32>
    %37 = math.rsqrt %36 : vector<32x1xf32>
    %c0_13 = arith.constant 0 : index
    %c0_14 = arith.constant 0 : index
    %38 = vector.load %arg4[%c0_13, %c0_14] : memref<2x128xf32, #tpu.memory_space<vmem>>, vector<1x128xf32>
    %c1 = arith.constant 1 : index
    %c0_15 = arith.constant 0 : index
    %39 = vector.load %arg4[%c1, %c0_15] : memref<2x128xf32, #tpu.memory_space<vmem>>, vector<1x128xf32>
    %40 = vector.broadcast %37 : vector<32x1xf32> to vector<32x128xf32>
    %41 = arith.mulf %29, %40 : vector<32x128xf32>
    %42 = vector.broadcast %38 : vector<1x128xf32> to vector<32x128xf32>
    %43 = arith.mulf %41, %42 : vector<32x128xf32>
    %44 = vector.broadcast %39 : vector<1x128xf32> to vector<32x128xf32>
    %45 = arith.addf %43, %44 : vector<32x128xf32>
    %c0_16 = arith.constant 0 : index
    %c0_17 = arith.constant 0 : index
    %46 = vector.load %arg5[%c0_16, %c0_17] : memref<32x128xf32, #tpu.memory_space<vmem>>, vector<32x128xf32>
    tpu.vector_store %arg5[%c0_16, %c0_17], %45 {strides = array<i32>} : memref<32x128xf32, #tpu.memory_space<vmem>>, vector<32x128xf32>,
    return
  }
}

</mosaic_0001>

<llo_original>
// kernel: edge_encoding.1
$region0: #{edge_encoding.1}
  #allocation0 [shape = 'u32[]', space=smem, size = 0x4, offset = 0x4, fixed_abs, tag = 'smem constant byte address 0x4 - core index']
  #allocation1 [shape = 'u32[144,128]{1,0:T(1,128)}', space=vmem, size = 0x12000, scoped, tag = 'internal scratch']
  %s0 = inlined_call_operand.vmem [shape: s32[32,1], index: 0, kind: input, shape index: {}]
  %s1 = inlined_call_operand.vmem [shape: s32[32,1], index: 1, kind: input, shape index: {}]
  %s2 = inlined_call_operand.vmem [shape: s32[32,1], index: 2, kind: input, shape index: {}]
  %s3 = inlined_call_operand.vmem [shape: f32[96,128], index: 3, kind: input, shape index: {}]
  %s4 = inlined_call_operand.vmem [shape: f32[2,128], index: 4, kind: input, shape index: {}]
  %s5 = inlined_call_operand.hbm [shape: f32[32,128], index: 5, kind: output, shape index: {}]
  %s6 = sld [smem:[#allocation0]]
  $region30: #{edge_encoding.1} parent=0
    _
  %s8 = ssub.s32 1, %s6
  %s9 = scalar_select 0, %s8, %s6
  $region1: #{edge_encoding.1} parent=0
    #allocation2 [shape = 'u8[16384]{0}', space=vmem, size = 0x4000, scoped, tag = 'output window, operand 0, single buffered']
    #allocation3 [shape = 's32[1]{0}', space=sflag, size = 0x4, scoped, tag = 'scoped memory for edge_encoding.1']
    %10 = vsyncpa [#allocation3], 0
    // Predicated region
    $region2: #{edge_encoding.1} parent=1 // pred_check
      _
    $region3: #{edge_encoding.1} parent=1 // pred_check_branch
      %12 = sbr.rel (0) target = $region5
    $region4: #{edge_encoding.1} parent=1 // pred_region
      _
    $region5: #{edge_encoding.1} parent=1 // pred_fallthru
      _
    // Predicated region
    $region6: #{edge_encoding.1} parent=1 // pred_check
      _
    $region7: #{edge_encoding.1} parent=1 // pred_check_branch
      %14 = sbr.rel (0) target = $region9
    $region8: #{edge_encoding.1} parent=1 // pred_region
      _
    $region9: #{edge_encoding.1} parent=1 // pred_fallthru
      _
    // Predicated region
    $region10: #{edge_encoding.1} parent=1 // pred_check
      _
    $region11: #{edge_encoding.1} parent=1 // pred_check_branch
      %16 = sbr.rel (0) target = $region13
    $region12: #{edge_encoding.1} parent=1 // pred_region
      _
    $region13: #{edge_encoding.1} parent=1 // pred_fallthru
      _
    // Predicated region
    $region14: #{edge_encoding.1} parent=1 // pred_check
      _
    $region15: #{edge_encoding.1} parent=1 // pred_check_branch
      %18 = sbr.rel (0) target = $region17
    $region16: #{edge_encoding.1} parent=1 // pred_region
      _
    $region17: #{edge_encoding.1} parent=1 // pred_fallthru
      _
    // Predicated region
    $region18: #{edge_encoding.1} parent=1 // pred_check
      _
    $region19: #{edge_encoding.1} parent=1 // pred_check_branch
      %20 = sbr.rel (0) target = $region21
    $region20: #{edge_encoding.1} parent=1 // pred_region
      _
    $region21: #{edge_encoding.1} parent=1 // pred_fallthru
      _
    %v21 = vld [vmem:[%s0] sm:$0xff]
    %v22 = vld [vmem:[%s0 + $0x8] sm:$0xff]
    %v23 = vld [vmem:[%s0 + $0x10] sm:$0xff]
    %v24 = vld [vmem:[%s0 + $0x18] sm:$0xff]
    %v25 = vld [vmem:[%s1] sm:$0xff]
    %v26 = vld [vmem:[%s1 + $0x8] sm:$0xff]
    %v27 = vld [vmem:[%s1 + $0x10] sm:$0xff]
    %v28 = vld [vmem:[%s1 + $0x18] sm:$0xff]
    %v29 = vadd.s32 %v25, 64
    %v30 = vadd.s32 %v26, 64
    %v31 = vadd.s32 %v27, 64
    %v32 = vadd.s32 %v28, 64
    %v33 = vld [vmem:[%s2] sm:$0xff]
    %v34 = vld [vmem:[%s2 + $0x8] sm:$0xff]
    %v35 = vld [vmem:[%s2 + $0x10] sm:$0xff]
    %v36 = vld [vmem:[%s2 + $0x18] sm:$0xff]
    %v37 = vadd.s32 %v33, 64
    %v38 = vadd.s32 %v34, 64
    %v39 = vadd.s32 %v35, 64
    %v40 = vadd.s32 %v36, 64
    %v41 = vlaneseq
    %v42 = vand.u32 %v41, 127
    %43 = vset.pattern.permute.xlu0 0
    %44 = vperm.xlu0 %43, %v21
    %v45 = vpop.permute.xlu0 %44
    %46 = vset.pattern.permute.xlu0 0
    %47 = vperm.xlu0 %46, %v22
    %v48 = vpop.permute.xlu0 %47
    %49 = vset.pattern.permute.xlu0 0
    %50 = vperm.xlu0 %49, %v23
    %v51 = vpop.permute.xlu0 %50
    %52 = vset.pattern.permute.xlu0 0
    %53 = vperm.xlu0 %52, %v24
    %v54 = vpop.permute.xlu0 %53
    %vm55 = vcmp.eq.s32.totalorder %v42, %v45
    %vm56 = vcmp.eq.s32.totalorder %v42, %v48
    %vm57 = vcmp.eq.s32.totalorder %v42, %v51
    %vm58 = vcmp.eq.s32.totalorder %v42, %v54
    %v59 = vsel %vm55, 1, 0
    %v60 = vsel %vm56, 1, 0
    %v61 = vsel %vm57, 1, 0
    %v62 = vsel %vm58, 1, 0
    %v63 = vcvt.s32.f32 %v59
    %v64 = vcvt.s32.f32 %v60
    %v65 = vcvt.s32.f32 %v61
    %v66 = vcvt.s32.f32 %v62
    %67 = vset.pattern.permute.xlu0 0
    %68 = vperm.xlu0 %67, %v29
    %v69 = vpop.permute.xlu0 %68
    %70 = vset.pattern.permute.xlu0 0
    %71 = vperm.xlu0 %70, %v30
    %v72 = vpop.permute.xlu0 %71
    %73 = vset.pattern.permute.xlu0 0
    %74 = vperm.xlu0 %73, %v31
    %v75 = vpop.permute.xlu0 %74
    %76 = vset.pattern.permute.xlu0 0
    %77 = vperm.xlu0 %76, %v32
    %v78 = vpop.permute.xlu0 %77
    %vm79 = vcmp.eq.s32.totalorder %v42, %v69
    %vm80 = vcmp.eq.s32.totalorder %v42, %v72
    %vm81 = vcmp.eq.s32.totalorder %v42, %v75
    %vm82 = vcmp.eq.s32.totalorder %v42, %v78
    %v83 = vsel %vm79, 1, 0
    %v84 = vsel %vm80, 1, 0
    %v85 = vsel %vm81, 1, 0
    %v86 = vsel %vm82, 1, 0
    %v87 = vcvt.s32.f32 %v83
    %v88 = vcvt.s32.f32 %v84
    %v89 = vcvt.s32.f32 %v85
    %v90 = vcvt.s32.f32 %v86
    %v91 = vadd.f32 %v63, %v87
    %v92 = vadd.f32 %v64, %v88
    %v93 = vadd.f32 %v65, %v89
    %v94 = vadd.f32 %v66, %v90
    %95 = vset.pattern.permute.xlu0 0
    %96 = vperm.xlu0 %95, %v37
    %v97 = vpop.permute.xlu0 %96
    %98 = vset.pattern.permute.xlu0 0
    %99 = vperm.xlu0 %98, %v38
    %v100 = vpop.permute.xlu0 %99
    %101 = vset.pattern.permute.xlu0 0
    %102 = vperm.xlu0 %101, %v39
    %v103 = vpop.permute.xlu0 %102
    %104 = vset.pattern.permute.xlu0 0
    %105 = vperm.xlu0 %104, %v40
    %v106 = vpop.permute.xlu0 %105
    %vm107 = vcmp.eq.s32.totalorder %v42, %v97
    %vm108 = vcmp.eq.s32.totalorder %v42, %v100
    %vm109 = vcmp.eq.s32.totalorder %v42, %v103
    %vm110 = vcmp.eq.s32.totalorder %v42, %v106
    %v111 = vsel %vm107, 1, 0
    %v112 = vsel %vm108, 1, 0
    %v113 = vsel %vm109, 1, 0
    %v114 = vsel %vm110, 1, 0
    %v115 = vcvt.s32.f32 %v111
    %v116 = vcvt.s32.f32 %v112
    %v117 = vcvt.s32.f32 %v113
    %v118 = vcvt.s32.f32 %v114
    %v119 = vadd.f32 %v91, %v115
    %v120 = vadd.f32 %v92, %v116
    %v121 = vadd.f32 %v93, %v117
    %v122 = vadd.f32 %v94, %v118
    %v123 = vld [vmem:[%s3] sm:$0xff]
    %v124 = vld [vmem:[%s3 + $0x8] sm:$0xff]
    %v125 = vld [vmem:[%s3 + $0x10] sm:$0xff]
    %v126 = vld [vmem:[%s3 + $0x18] sm:$0xff]
    %v127 = vld [vmem:[%s3 + $0x20] sm:$0xff]
    %v128 = vld [vmem:[%s3 + $0x28] sm:$0xff]
    %v129 = vld [vmem:[%s3 + $0x30] sm:$0xff]
    %v130 = vld [vmem:[%s3 + $0x38] sm:$0xff]
    %v131 = vld [vmem:[%s3 + $0x40] sm:$0xff]
    %v132 = vld [vmem:[%s3 + $0x48] sm:$0xff]
    %v133 = vld [vmem:[%s3 + $0x50] sm:$0xff]
    %v134 = vld [vmem:[%s3 + $0x58] sm:$0xff]
    %vm135 = vcmask 785408
    %v137 = vsel %vm135, %v119, 0
    %v140 = vsel %vm135, %v120, 0
    %v143 = vsel %vm135, %v121, 0
    %v146 = vsel %vm135, %v122, 0
    %148 = vmatprep.subr.mxu0 0.0
    %v149 = vand.u32 %v123, 4294901760
    %150 = vmatpush1.msra.mxu0 %v149
    %151 = vmatprep.subr.mxu0 0.0
    %v152 = vand.u32 %v124, 4294901760
    %153 = vmatpush1.msra.mxu0 %v152
    %154 = vmatprep.subr.mxu0 0.0
    %v155 = vand.u32 %v125, 4294901760
    %156 = vmatpush1.msra.mxu0 %v155
    %157 = vmatprep.subr.mxu0 0.0
    %v158 = vand.u32 %v126, 4294901760
    %159 = vmatpush1.msra.mxu0 %v158
    %160 = vmatprep.subr.mxu0 0.0
    %v161 = vand.u32 %v127, 4294901760
    %162 = vmatpush1.msra.mxu0 %v161
    %163 = vmatprep.subr.mxu0 0.0
    %v164 = vand.u32 %v128, 4294901760
    %165 = vmatpush1.msra.mxu0 %v164
    %166 = vmatprep.subr.mxu0 0.0
    %v167 = vand.u32 %v129, 4294901760
    %168 = vmatpush1.msra.mxu0 %v167
    %169 = vmatprep.subr.mxu0 0.0
    %v170 = vand.u32 %v130, 4294901760
    %171 = vmatpush1.msra.mxu0 %v170
    %172 = vmatprep.subr.mxu0 0.0
    %v173 = vand.u32 %v131, 4294901760
    %174 = vmatpush1.msra.mxu0 %v173
    %175 = vmatprep.subr.mxu0 0.0
    %v176 = vand.u32 %v132, 4294901760
    %177 = vmatpush1.msra.mxu0 %v176
    %178 = vmatprep.subr.mxu0 0.0
    %v179 = vand.u32 %v133, 4294901760
    %180 = vmatpush1.msra.mxu0 %v179
    %181 = vmatprep.subr.mxu0 0.0
    %v182 = vand.u32 %v134, 4294901760
    %183 = vmatpush1.msra.mxu0 %v182
    %184 = vmatprep.subr.mxu0 0.0
    %185 = vmatpush1.msra.mxu0 0.0
    %186 = vmatprep.subr.mxu0 0.0
    %187 = vmatpush1.msra.mxu0 0.0
    %188 = vmatprep.subr.mxu0 0.0
    %189 = vmatpush1.msra.mxu0 0.0
    %190 = vmatprep.subr.mxu0 0.0
    %191 = vmatpush1.msra.mxu0 0.0
    %192 = vmatprep.subr.mxu0 0.0
    %193 = vmatpush1.msra.mxu0 0.0
    %194 = vmatprep.subr.mxu0 0.0
    %195 = vmatpush1.msra.mxu0 0.0
    %196 = vmatprep.subr.mxu0 0.0
    %197 = vmatpush1.msra.mxu0 0.0
    %198 = vmatprep.subr.mxu0 0.0
    %199 = vmatpush1.msra.mxu0 0.0
    %200 = vmatprep.subr.mxu0 0.0
    %201 = vmatpush1.msra.mxu0 0.0
    %202 = vmatprep.subr.mxu0 0.0
    %203 = vmatpush1.msra.mxu0 0.0
    %204 = vmatprep.subr.mxu0 0.0
    %205 = vmatpush1.msra.mxu0 0.0
    %206 = vmatprep.subr.mxu0 0.0
    %207 = vmatpush1.msra.mxu0 0.0
    %208 = vmatprep.subr.mxu0 0.0
    %209 = vmatpush1.msra.mxu0 0.0
    %210 = vmatprep.subr.mxu0 0.0
    %211 = vmatpush1.msra.mxu0 0.0
    %212 = vmatprep.subr.mxu0 0.0
    %213 = vmatpush1.msra.mxu0 0.0
    %214 = vmatprep.subr.mxu0 0.0
    %215 = vmatpush1.msra.mxu0 0.0
    %216 = vmatprep.subr.mxu0 0.0
    %217 = vmatpush1.msra.mxu0 0.0
    %218 = vmatprep.subr.mxu0 0.0
    %219 = vmatpush1.msra.mxu0 0.0
    %220 = vmatprep.subr.mxu0 0.0
    %221 = vmatpush1.msra.mxu0 0.0
    %222 = vmatprep.subr.mxu0 0.0
    %223 = vmatpush1.msra.mxu0 0.0
    %224 = vmatprep.mubr.f32.mxu0 0.0
    %v225 = vand.u32 %v137, 4294901760
    %v226 = vsub.f32 %v137, %v225
    %v227 = vand.u32 %v226, 4294901760
    %v228 = vsub.f32 %v226, %v227
    %v229 = vand.u32 %v228, 4294901760
    %230 = vmatmul.mubr.f32.gmra.mrb[0].mxu0 %v229
    %v231 = vpop.f32.mrb[0].mxu0
    %v232 = vadd.f32 0.0, %v231
    %v233 = vpop.f32.mrb[0].mxu0
    %234 = vmatprep.mubr.f32.mxu0 0.0
    %v235 = vand.u32 %v140, 4294901760
    %v236 = vsub.f32 %v140, %v235
    %v237 = vand.u32 %v236, 4294901760
    %v238 = vsub.f32 %v236, %v237
    %v239 = vand.u32 %v238, 4294901760
    %240 = vmatmul.mubr.f32.gmra.mrb[0].mxu0 %v239
    %v241 = vpop.f32.mrb[0].mxu0
    %v242 = vadd.f32 0.0, %v241
    %v243 = vpop.f32.mrb[0].mxu0
    %244 = vmatprep.mubr.f32.mxu0 0.0
    %v245 = vand.u32 %v143, 4294901760
    %v246 = vsub.f32 %v143, %v245
    %v247 = vand.u32 %v246, 4294901760
    %v248 = vsub.f32 %v246, %v247
    %v249 = vand.u32 %v248, 4294901760
    %250 = vmatmul.mubr.f32.gmra.mrb[0].mxu0 %v249
    %v251 = vpop.f32.mrb[0].mxu0
    %v252 = vadd.f32 0.0, %v251
    %v253 = vpop.f32.mrb[0].mxu0
    %254 = vmatprep.mubr.f32.mxu0 0.0
    %v255 = vand.u32 %v146, 4294901760
    %v256 = vsub.f32 %v146, %v255
    %v257 = vand.u32 %v256, 4294901760
    %v258 = vsub.f32 %v256, %v257
    %v259 = vand.u32 %v258, 4294901760
    %260 = vmatmul.mubr.f32.gmra.mrb[0].mxu0 %v259
    %v261 = vpop.f32.mrb[0].mxu0
    %v262 = vadd.f32 0.0, %v261
    %v263 = vpop.f32.mrb[0].mxu0
    %264 = vdwg.mxu0
    %265 = vmatprep.subr.mxu0 0.0
    %v266 = vand.u32 %v123, 4294901760
    %v267 = vsub.f32 %v123, %v266
    %v268 = vand.u32 %v267, 4294901760
    %v269 = vsub.f32 %v267, %v268
    %v270 = vand.u32 %v269, 4294901760
    %271 = vmatpush1.msra.mxu0 %v270
    %272 = vmatprep.subr.mxu0 0.0
    %v273 = vand.u32 %v124, 4294901760
    %v274 = vsub.f32 %v124, %v273
    %v275 = vand.u32 %v274, 4294901760
    %v276 = vsub.f32 %v274, %v275
    %v277 = vand.u32 %v276, 4294901760
    %278 = vmatpush1.msra.mxu0 %v277
    %279 = vmatprep.subr.mxu0 0.0
    %v280 = vand.u32 %v125, 4294901760
    %v281 = vsub.f32 %v125, %v280
    %v282 = vand.u32 %v281, 4294901760
    %v283 = vsub.f32 %v281, %v282
    %v284 = vand.u32 %v283, 4294901760
    %285 = vmatpush1.msra.mxu0 %v284
    %286 = vmatprep.subr.mxu0 0.0
    %v287 = vand.u32 %v126, 4294901760
    %v288 = vsub.f32 %v126, %v287
    %v289 = vand.u32 %v288, 4294901760
    %v290 = vsub.f32 %v288, %v289
    %v291 = vand.u32 %v290, 4294901760
    %292 = vmatpush1.msra.mxu0 %v291
    %293 = vmatprep.subr.mxu0 0.0
    %v294 = vand.u32 %v127, 4294901760
    %v295 = vsub.f32 %v127, %v294
    %v296 = vand.u32 %v295, 4294901760
    %v297 = vsub.f32 %v295, %v296
    %v298 = vand.u32 %v297, 4294901760
    %299 = vmatpush1.msra.mxu0 %v298
    %300 = vmatprep.subr.mxu0 0.0
    %v301 = vand.u32 %v128, 4294901760
    %v302 = vsub.f32 %v128, %v301
    %v303 = vand.u32 %v302, 4294901760
    %v304 = vsub.f32 %v302, %v303
    %v305 = vand.u32 %v304, 4294901760
    %306 = vmatpush1.msra.mxu0 %v305
    %307 = vmatprep.subr.mxu0 0.0
    %v308 = vand.u32 %v129, 4294901760
    %v309 = vsub.f32 %v129, %v308
    %v310 = vand.u32 %v309, 4294901760
    %v311 = vsub.f32 %v309, %v310
    %v312 = vand.u32 %v311, 4294901760
    %313 = vmatpush1.msra.mxu0 %v312
    %314 = vmatprep.subr.mxu0 0.0
    %v315 = vand.u32 %v130, 4294901760
    %v316 = vsub.f32 %v130, %v315
    %v317 = vand.u32 %v316, 4294901760
    %v318 = vsub.f32 %v316, %v317
    %v319 = vand.u32 %v318, 4294901760
    %320 = vmatpush1.msra.mxu0 %v319
    %321 = vmatprep.subr.mxu0 0.0
    %v322 = vand.u32 %v131, 4294901760
    %v323 = vsub.f32 %v131, %v322
    %v324 = vand.u32 %v323, 4294901760
    %v325 = vsub.f32 %v323, %v324
    %v326 = vand.u32 %v325, 4294901760
    %327 = vmatpush1.msra.mxu0 %v326
    %328 = vmatprep.subr.mxu0 0.0
    %v329 = vand.u32 %v132, 4294901760
    %v330 = vsub.f32 %v132, %v329
    %v331 = vand.u32 %v330, 4294901760
    %v332 = vsub.f32 %v330, %v331
    %v333 = vand.u32 %v332, 4294901760
    %334 = vmatpush1.msra.mxu0 %v333
    %335 = vmatprep.subr.mxu0 0.0
    %v336 = vand.u32 %v133, 4294901760
    %v337 = vsub.f32 %v133, %v336
    %v338 = vand.u32 %v337, 4294901760
    %v339 = vsub.f32 %v337, %v338
    %v340 = vand.u32 %v339, 4294901760
    %341 = vmatpush1.msra.mxu0 %v340
    %342 = vmatprep.subr.mxu0 0.0
    %v343 = vand.u32 %v134, 4294901760
    %v344 = vsub.f32 %v134, %v343
    %v345 = vand.u32 %v344, 4294901760
    %v346 = vsub.f32 %v344, %v345
    %v347 = vand.u32 %v346, 4294901760
    %348 = vmatpush1.msra.mxu0 %v347
    %349 = vmatprep.subr.mxu0 0.0
    %350 = vmatpush1.msra.mxu0 0.0
    %351 = vmatprep.subr.mxu0 0.0
    %352 = vmatpush1.msra.mxu0 0.0
    %353 = vmatprep.subr.mxu0 0.0
    %354 = vmatpush1.msra.mxu0 0.0
    %355 = vmatprep.subr.mxu0 0.0
    %356 = vmatpush1.msra.mxu0 0.0
    %357 = vmatprep.subr.mxu0 0.0
    %358 = vmatpush1.msra.mxu0 0.0
    %359 = vmatprep.subr.mxu0 0.0
    %360 = vmatpush1.msra.mxu0 0.0
    %361 = vmatprep.subr.mxu0 0.0
    %362 = vmatpush1.msra.mxu0 0.0
    %363 = vmatprep.subr.mxu0 0.0
    %364 = vmatpush1.msra.mxu0 0.0
    %365 = vmatprep.subr.mxu0 0.0
    %366 = vmatpush1.msra.mxu0 0.0
    %367 = vmatprep.subr.mxu0 0.0
    %368 = vmatpush1.msra.mxu0 0.0
    %369 = vmatprep.subr.mxu0 0.0
    %370 = vmatpush1.msra.mxu0 0.0
    %371 = vmatprep.subr.mxu0 0.0
    %372 = vmatpush1.msra.mxu0 0.0
    %373 = vmatprep.subr.mxu0 0.0
    %374 = vmatpush1.msra.mxu0 0.0
    %375 = vmatprep.subr.mxu0 0.0
    %376 = vmatpush1.msra.mxu0 0.0
    %377 = vmatprep.subr.mxu0 0.0
    %378 = vmatpush1.msra.mxu0 0.0
    %379 = vmatprep.subr.mxu0 0.0
    %380 = vmatpush1.msra.mxu0 0.0
    %381 = vmatprep.subr.mxu0 0.0
    %382 = vmatpush1.msra.mxu0 0.0
    %383 = vmatprep.subr.mxu0 0.0
    %384 = vmatpush1.msra.mxu0 0.0
    %385 = vmatprep.subr.mxu0 0.0
    %386 = vmatpush1.msra.mxu0 0.0
    %387 = vmatprep.subr.mxu0 0.0
    %388 = vmatpush1.msra.mxu0 0.0
    %389 = vmatprep.mubr.f32.mxu0 0.0
    %v390 = vand.u32 %v137, 4294901760
    %391 = vmatmul.mubr.f32.gmra.mrb[0].mxu0 %v390
    %v392 = vpop.f32.mrb[0].mxu0
    %v393 = vadd.f32 %v232, %v392
    %v394 = vpop.f32.mrb[0].mxu0
    %395 = vmatprep.mubr.f32.mxu0 0.0
    %v396 = vand.u32 %v140, 4294901760
    %397 = vmatmul.mubr.f32.gmra.mrb[0].mxu0 %v396
    %v398 = vpop.f32.mrb[0].mxu0
    %v399 = vadd.f32 %v242, %v398
    %v400 = vpop.f32.mrb[0].mxu0
    %401 = vmatprep.mubr.f32.mxu0 0.0
    %v402 = vand.u32 %v143, 4294901760
    %403 = vmatmul.mubr.f32.gmra.mrb[0].mxu0 %v402
    %v404 = vpop.f32.mrb[0].mxu0
    %v405 = vadd.f32 %v252, %v404
    %v406 = vpop.f32.mrb[0].mxu0
    %407 = vmatprep.mubr.f32.mxu0 0.0
    %v408 = vand.u32 %v146, 4294901760
    %409 = vmatmul.mubr.f32.gmra.mrb[0].mxu0 %v408
    %v410 = vpop.f32.mrb[0].mxu0
    %v411 = vadd.f32 %v262, %v410
    %v412 = vpop.f32.mrb[0].mxu0
    %413 = vdwg.mxu0
    %414 = vmatprep.subr.mxu0 0.0
    %v415 = vand.u32 %v123, 4294901760
    %v416 = vsub.f32 %v123, %v415
    %417 = vmatpush1.msra.mxu0 %v416
    %418 = vmatprep.subr.mxu0 0.0
    %v419 = vand.u32 %v124, 4294901760
    %v420 = vsub.f32 %v124, %v419
    %421 = vmatpush1.msra.mxu0 %v420
    %422 = vmatprep.subr.mxu0 0.0
    %v423 = vand.u32 %v125, 4294901760
    %v424 = vsub.f32 %v125, %v423
    %425 = vmatpush1.msra.mxu0 %v424
    %426 = vmatprep.subr.mxu0 0.0
    %v427 = vand.u32 %v126, 4294901760
    %v428 = vsub.f32 %v126, %v427
    %429 = vmatpush1.msra.mxu0 %v428
    %430 = vmatprep.subr.mxu0 0.0
    %v431 = vand.u32 %v127, 4294901760
    %v432 = vsub.f32 %v127, %v431
    %433 = vmatpush1.msra.mxu0 %v432
    %434 = vmatprep.subr.mxu0 0.0
    %v435 = vand.u32 %v128, 4294901760
    %v436 = vsub.f32 %v128, %v435
    %437 = vmatpush1.msra.mxu0 %v436
    %438 = vmatprep.subr.mxu0 0.0
    %v439 = vand.u32 %v129, 4294901760
    %v440 = vsub.f32 %v129, %v439
    %441 = vmatpush1.msra.mxu0 %v440
    %442 = vmatprep.subr.mxu0 0.0
    %v443 = vand.u32 %v130, 4294901760
    %v444 = vsub.f32 %v130, %v443
    %445 = vmatpush1.msra.mxu0 %v444
    %446 = vmatprep.subr.mxu0 0.0
    %v447 = vand.u32 %v131, 4294901760
    %v448 = vsub.f32 %v131, %v447
    %449 = vmatpush1.msra.mxu0 %v448
    %450 = vmatprep.subr.mxu0 0.0
    %v451 = vand.u32 %v132, 4294901760
    %v452 = vsub.f32 %v132, %v451
    %453 = vmatpush1.msra.mxu0 %v452
    %454 = vmatprep.subr.mxu0 0.0
    %v455 = vand.u32 %v133, 4294901760
    %v456 = vsub.f32 %v133, %v455
    %457 = vmatpush1.msra.mxu0 %v456
    %458 = vmatprep.subr.mxu0 0.0
    %v459 = vand.u32 %v134, 4294901760
    %v460 = vsub.f32 %v134, %v459
    %461 = vmatpush1.msra.mxu0 %v460
    %462 = vmatprep.subr.mxu0 0.0
    %463 = vmatpush1.msra.mxu0 0.0
    %464 = vmatprep.subr.mxu0 0.0
    %465 = vmatpush1.msra.mxu0 0.0
    %466 = vmatprep.subr.mxu0 0.0
    %467 = vmatpush1.msra.mxu0 0.0
    %468 = vmatprep.subr.mxu0 0.0
    %469 = vmatpush1.msra.mxu0 0.0
    %470 = vmatprep.subr.mxu0 0.0
    %471 = vmatpush1.msra.mxu0 0.0
    %472 = vmatprep.subr.mxu0 0.0
    %473 = vmatpush1.msra.mxu0 0.0
    %474 = vmatprep.subr.mxu0 0.0
    %475 = vmatpush1.msra.mxu0 0.0
    %476 = vmatprep.subr.mxu0 0.0
    %477 = vmatpush1.msra.mxu0 0.0
    %478 = vmatprep.subr.mxu0 0.0
    %479 = vmatpush1.msra.mxu0 0.0
    %480 = vmatprep.subr.mxu0 0.0
    %481 = vmatpush1.msra.mxu0 0.0
    %482 = vmatprep.subr.mxu0 0.0
    %483 = vmatpush1.msra.mxu0 0.0
    %484 = vmatprep.subr.mxu0 0.0
    %485 = vmatpush1.msra.mxu0 0.0
    %486 = vmatprep.subr.mxu0 0.0
    %487 = vmatpush1.msra.mxu0 0.0
    %488 = vmatprep.subr.mxu0 0.0
    %489 = vmatpush1.msra.mxu0 0.0
    %490 = vmatprep.subr.mxu0 0.0
    %491 = vmatpush1.msra.mxu0 0.0
    %492 = vmatprep.subr.mxu0 0.0
    %493 = vmatpush1.msra.mxu0 0.0
    %494 = vmatprep.subr.mxu0 0.0
    %495 = vmatpush1.msra.mxu0 0.0
    %496 = vmatprep.subr.mxu0 0.0
    %497 = vmatpush1.msra.mxu0 0.0
    %498 = vmatprep.subr.mxu0 0.0
    %499 = vmatpush1.msra.mxu0 0.0
    %500 = vmatprep.subr.mxu0 0.0
    %501 = vmatpush1.msra.mxu0 0.0
    %502 = vmatprep.mubr.f32.mxu0 0.0
    %v503 = vand.u32 %v137, 4294901760
    %v504 = vsub.f32 %v137, %v503
    %505 = vmatmul.mubr.f32.gmra.mrb[0].mxu0 %v504
    %v506 = vpop.f32.mrb[0].mxu0
    %v507 = vadd.f32 %v393, %v506
    %v508 = vpop.f32.mrb[0].mxu0
    %509 = vmatprep.mubr.f32.mxu0 0.0
    %v510 = vand.u32 %v140, 4294901760
    %v511 = vsub.f32 %v140, %v510
    %512 = vmatmul.mubr.f32.gmra.mrb[0].mxu0 %v511
    %v513 = vpop.f32.mrb[0].mxu0
    %v514 = vadd.f32 %v399, %v513
    %v515 = vpop.f32.mrb[0].mxu0
    %516 = vmatprep.mubr.f32.mxu0 0.0
    %v517 = vand.u32 %v143, 4294901760
    %v518 = vsub.f32 %v143, %v517
    %519 = vmatmul.mubr.f32.gmra.mrb[0].mxu0 %v518
    %v520 = vpop.f32.mrb[0].mxu0
    %v521 = vadd.f32 %v405, %v520
    %v522 = vpop.f32.mrb[0].mxu0
    %523 = vmatprep.mubr.f32.mxu0 0.0
    %v524 = vand.u32 %v146, 4294901760
    %v525 = vsub.f32 %v146, %v524
    %526 = vmatmul.mubr.f32.gmra.mrb[0].mxu0 %v525
    %v527 = vpop.f32.mrb[0].mxu0
    %v528 = vadd.f32 %v411, %v527
    %v529 = vpop.f32.mrb[0].mxu0
    %530 = vdwg.mxu0
    %531 = vmatprep.subr.mxu0 0.0
    %v532 = vand.u32 %v123, 4294901760
    %533 = vmatpush1.msra.mxu0 %v532
    %534 = vmatprep.subr.mxu0 0.0
    %v535 = vand.u32 %v124, 4294901760
    %536 = vmatpush1.msra.mxu0 %v535
    %537 = vmatprep.subr.mxu0 0.0
    %v538 = vand.u32 %v125, 4294901760
    %539 = vmatpush1.msra.mxu0 %v538
    %540 = vmatprep.subr.mxu0 0.0
    %v541 = vand.u32 %v126, 4294901760
    %542 = vmatpush1.msra.mxu0 %v541
    %543 = vmatprep.subr.mxu0 0.0
    %v544 = vand.u32 %v127, 4294901760
    %545 = vmatpush1.msra.mxu0 %v544
    %546 = vmatprep.subr.mxu0 0.0
    %v547 = vand.u32 %v128, 4294901760
    %548 = vmatpush1.msra.mxu0 %v547
    %549 = vmatprep.subr.mxu0 0.0
    %v550 = vand.u32 %v129, 4294901760
    %551 = vmatpush1.msra.mxu0 %v550
    %552 = vmatprep.subr.mxu0 0.0
    %v553 = vand.u32 %v130, 4294901760
    %554 = vmatpush1.msra.mxu0 %v553
    %555 = vmatprep.subr.mxu0 0.0
    %v556 = vand.u32 %v131, 4294901760
    %557 = vmatpush1.msra.mxu0 %v556
    %558 = vmatprep.subr.mxu0 0.0
    %v559 = vand.u32 %v132, 4294901760
    %560 = vmatpush1.msra.mxu0 %v559
    %561 = vmatprep.subr.mxu0 0.0
    %v562 = vand.u32 %v133, 4294901760
    %563 = vmatpush1.msra.mxu0 %v562
    %564 = vmatprep.subr.mxu0 0.0
    %v565 = vand.u32 %v134, 4294901760
    %566 = vmatpush1.msra.mxu0 %v565
    %567 = vmatprep.subr.mxu0 0.0
    %568 = vmatpush1.msra.mxu0 0.0
    %569 = vmatprep.subr.mxu0 0.0
    %570 = vmatpush1.msra.mxu0 0.0
    %571 = vmatprep.subr.mxu0 0.0
    %572 = vmatpush1.msra.mxu0 0.0
    %573 = vmatprep.subr.mxu0 0.0
    %574 = vmatpush1.msra.mxu0 0.0
    %575 = vmatprep.subr.mxu0 0.0
    %576 = vmatpush1.msra.mxu0 0.0
    %577 = vmatprep.subr.mxu0 0.0
    %578 = vmatpush1.msra.mxu0 0.0
    %579 = vmatprep.subr.mxu0 0.0
    %580 = vmatpush1.msra.mxu0 0.0
    %581 = vmatprep.subr.mxu0 0.0
    %582 = vmatpush1.msra.mxu0 0.0
    %583 = vmatprep.subr.mxu0 0.0
    %584 = vmatpush1.msra.mxu0 0.0
    %585 = vmatprep.subr.mxu0 0.0
    %586 = vmatpush1.msra.mxu0 0.0
    %587 = vmatprep.subr.mxu0 0.0
    %588 = vmatpush1.msra.mxu0 0.0
    %589 = vmatprep.subr.mxu0 0.0
    %590 = vmatpush1.msra.mxu0 0.0
    %591 = vmatprep.subr.mxu0 0.0
    %592 = vmatpush1.msra.mxu0 0.0
    %593 = vmatprep.subr.mxu0 0.0
    %594 = vmatpush1.msra.mxu0 0.0
    %595 = vmatprep.subr.mxu0 0.0
    %596 = vmatpush1.msra.mxu0 0.0
    %597 = vmatprep.subr.mxu0 0.0
    %598 = vmatpush1.msra.mxu0 0.0
    %599 = vmatprep.subr.mxu0 0.0
    %600 = vmatpush1.msra.mxu0 0.0
    %601 = vmatprep.subr.mxu0 0.0
    %602 = vmatpush1.msra.mxu0 0.0
    %603 = vmatprep.subr.mxu0 0.0
    %604 = vmatpush1.msra.mxu0 0.0
    %605 = vmatprep.subr.mxu0 0.0
    %606 = vmatpush1.msra.mxu0 0.0
    %607 = vmatprep.mubr.f32.mxu0 0.0
    %v608 = vand.u32 %v137, 4294901760
    %v609 = vsub.f32 %v137, %v608
    %v610 = vand.u32 %v609, 4294901760
    %611 = vmatmul.mubr.f32.gmra.mrb[0].mxu0 %v610
    %v612 = vpop.f32.mrb[0].mxu0
    %v613 = vadd.f32 %v507, %v612
    %v614 = vpop.f32.mrb[0].mxu0
    %615 = vmatprep.mubr.f32.mxu0 0.0
    %v616 = vand.u32 %v140, 4294901760
    %v617 = vsub.f32 %v140, %v616
    %v618 = vand.u32 %v617, 4294901760
    %619 = vmatmul.mubr.f32.gmra.mrb[0].mxu0 %v618
    %v620 = vpop.f32.mrb[0].mxu0
    %v621 = vadd.f32 %v514, %v620
    %v622 = vpop.f32.mrb[0].mxu0
    %623 = vmatprep.mubr.f32.mxu0 0.0
    %v624 = vand.u32 %v143, 4294901760
    %v625 = vsub.f32 %v143, %v624
    %v626 = vand.u32 %v625, 4294901760
    %627 = vmatmul.mubr.f32.gmra.mrb[0].mxu0 %v626
    %v628 = vpop.f32.mrb[0].mxu0
    %v629 = vadd.f32 %v521, %v628
    %v630 = vpop.f32.mrb[0].mxu0
    %631 = vmatprep.mubr.f32.mxu0 0.0
    %v632 = vand.u32 %v146, 4294901760
    %v633 = vsub.f32 %v146, %v632
    %v634 = vand.u32 %v633, 4294901760
    %635 = vmatmul.mubr.f32.gmra.mrb[0].mxu0 %v634
    %v636 = vpop.f32.mrb[0].mxu0
    %v637 = vadd.f32 %v528, %v636
    %v638 = vpop.f32.mrb[0].mxu0
    %639 = vdwg.mxu0
    %640 = vmatprep.subr.mxu0 0.0
    %v641 = vand.u32 %v123, 4294901760
    %v642 = vsub.f32 %v123, %v641
    %v643 = vand.u32 %v642, 4294901760
    %644 = vmatpush1.msra.mxu0 %v643
    %645 = vmatprep.subr.mxu0 0.0
    %v646 = vand.u32 %v124, 4294901760
    %v647 = vsub.f32 %v124, %v646
    %v648 = vand.u32 %v647, 4294901760
    %649 = vmatpush1.msra.mxu0 %v648
    %650 = vmatprep.subr.mxu0 0.0
    %v651 = vand.u32 %v125, 4294901760
    %v652 = vsub.f32 %v125, %v651
    %v653 = vand.u32 %v652, 4294901760
    %654 = vmatpush1.msra.mxu0 %v653
    %655 = vmatprep.subr.mxu0 0.0
    %v656 = vand.u32 %v126, 4294901760
    %v657 = vsub.f32 %v126, %v656
    %v658 = vand.u32 %v657, 4294901760
    %659 = vmatpush1.msra.mxu0 %v658
    %660 = vmatprep.subr.mxu0 0.0
    %v661 = vand.u32 %v127, 4294901760
    %v662 = vsub.f32 %v127, %v661
    %v663 = vand.u32 %v662, 4294901760
    %664 = vmatpush1.msra.mxu0 %v663
    %665 = vmatprep.subr.mxu0 0.0
    %v666 = vand.u32 %v128, 4294901760
    %v667 = vsub.f32 %v128, %v666
    %v668 = vand.u32 %v667, 4294901760
    %669 = vmatpush1.msra.mxu0 %v668
    %670 = vmatprep.subr.mxu0 0.0
    %v671 = vand.u32 %v129, 4294901760
    %v672 = vsub.f32 %v129, %v671
    %v673 = vand.u32 %v672, 4294901760
    %674 = vmatpush1.msra.mxu0 %v673
    %675 = vmatprep.subr.mxu0 0.0
    %v676 = vand.u32 %v130, 4294901760
    %v677 = vsub.f32 %v130, %v676
    %v678 = vand.u32 %v677, 4294901760
    %679 = vmatpush1.msra.mxu0 %v678
    %680 = vmatprep.subr.mxu0 0.0
    %v681 = vand.u32 %v131, 4294901760
    %v682 = vsub.f32 %v131, %v681
    %v683 = vand.u32 %v682, 4294901760
    %684 = vmatpush1.msra.mxu0 %v683
    %685 = vmatprep.subr.mxu0 0.0
    %v686 = vand.u32 %v132, 4294901760
    %v687 = vsub.f32 %v132, %v686
    %v688 = vand.u32 %v687, 4294901760
    %689 = vmatpush1.msra.mxu0 %v688
    %690 = vmatprep.subr.mxu0 0.0
    %v691 = vand.u32 %v133, 4294901760
    %v692 = vsub.f32 %v133, %v691
    %v693 = vand.u32 %v692, 4294901760
    %694 = vmatpush1.msra.mxu0 %v693
    %695 = vmatprep.subr.mxu0 0.0
    %v696 = vand.u32 %v134, 4294901760
    %v697 = vsub.f32 %v134, %v696
    %v698 = vand.u32 %v697, 4294901760
    %699 = vmatpush1.msra.mxu0 %v698
    %700 = vmatprep.subr.mxu0 0.0
    %701 = vmatpush1.msra.mxu0 0.0
    %702 = vmatprep.subr.mxu0 0.0
    %703 = vmatpush1.msra.mxu0 0.0
    %704 = vmatprep.subr.mxu0 0.0
    %705 = vmatpush1.msra.mxu0 0.0
    %706 = vmatprep.subr.mxu0 0.0
    %707 = vmatpush1.msra.mxu0 0.0
    %708 = vmatprep.subr.mxu0 0.0
    %709 = vmatpush1.msra.mxu0 0.0
    %710 = vmatprep.subr.mxu0 0.0
    %711 = vmatpush1.msra.mxu0 0.0
    %712 = vmatprep.subr.mxu0 0.0
    %713 = vmatpush1.msra.mxu0 0.0
    %714 = vmatprep.subr.mxu0 0.0
    %715 = vmatpush1.msra.mxu0 0.0
    %716 = vmatprep.subr.mxu0 0.0
    %717 = vmatpush1.msra.mxu0 0.0
    %718 = vmatprep.subr.mxu0 0.0
    %719 = vmatpush1.msra.mxu0 0.0
    %720 = vmatprep.subr.mxu0 0.0
    %721 = vmatpush1.msra.mxu0 0.0
    %722 = vmatprep.subr.mxu0 0.0
    %723 = vmatpush1.msra.mxu0 0.0
    %724 = vmatprep.subr.mxu0 0.0
    %725 = vmatpush1.msra.mxu0 0.0
    %726 = vmatprep.subr.mxu0 0.0
    %727 = vmatpush1.msra.mxu0 0.0
    %728 = vmatprep.subr.mxu0 0.0
    %729 = vmatpush1.msra.mxu0 0.0
    %730 = vmatprep.subr.mxu0 0.0
    %731 = vmatpush1.msra.mxu0 0.0
    %732 = vmatprep.subr.mxu0 0.0
    %733 = vmatpush1.msra.mxu0 0.0
    %734 = vmatprep.subr.mxu0 0.0
    %735 = vmatpush1.msra.mxu0 0.0
    %736 = vmatprep.subr.mxu0 0.0
    %737 = vmatpush1.msra.mxu0 0.0
    %738 = vmatprep.subr.mxu0 0.0
    %739 = vmatpush1.msra.mxu0 0.0
    %740 = vmatprep.mubr.f32.mxu0 0.0
    %v741 = vand.u32 %v137, 4294901760
    %742 = vmatmul.mubr.f32.gmra.mrb[0].mxu0 %v741
    %v743 = vpop.f32.mrb[0].mxu0
    %v744 = vadd.f32 %v613, %v743
    %v745 = vpop.f32.mrb[0].mxu0
    %746 = vmatprep.mubr.f32.mxu0 0.0
    %v747 = vand.u32 %v140, 4294901760
    %748 = vmatmul.mubr.f32.gmra.mrb[0].mxu0 %v747
    %v749 = vpop.f32.mrb[0].mxu0
    %v750 = vadd.f32 %v621, %v749
    %v751 = vpop.f32.mrb[0].mxu0
    %752 = vmatprep.mubr.f32.mxu0 0.0
    %v753 = vand.u32 %v143, 4294901760
    %754 = vmatmul.mubr.f32.gmra.mrb[0].mxu0 %v753
    %v755 = vpop.f32.mrb[0].mxu0
    %v756 = vadd.f32 %v629, %v755
    %v757 = vpop.f32.mrb[0].mxu0
    %758 = vmatprep.mubr.f32.mxu0 0.0
    %v759 = vand.u32 %v146, 4294901760
    %760 = vmatmul.mubr.f32.gmra.mrb[0].mxu0 %v759
    %v761 = vpop.f32.mrb[0].mxu0
    %v762 = vadd.f32 %v637, %v761
    %v763 = vpop.f32.mrb[0].mxu0
    %764 = vdwg.mxu0
    %765 = vmatprep.subr.mxu0 0.0
    %v766 = vand.u32 %v123, 4294901760
    %767 = vmatpush1.msra.mxu0 %v766
    %768 = vmatprep.subr.mxu0 0.0
    %v769 = vand.u32 %v124, 4294901760
    %770 = vmatpush1.msra.mxu0 %v769
    %771 = vmatprep.subr.mxu0 0.0
    %v772 = vand.u32 %v125, 4294901760
    %773 = vmatpush1.msra.mxu0 %v772
    %774 = vmatprep.subr.mxu0 0.0
    %v775 = vand.u32 %v126, 4294901760
    %776 = vmatpush1.msra.mxu0 %v775
    %777 = vmatprep.subr.mxu0 0.0
    %v778 = vand.u32 %v127, 4294901760
    %779 = vmatpush1.msra.mxu0 %v778
    %780 = vmatprep.subr.mxu0 0.0
    %v781 = vand.u32 %v128, 4294901760
    %782 = vmatpush1.msra.mxu0 %v781
    %783 = vmatprep.subr.mxu0 0.0
    %v784 = vand.u32 %v129, 4294901760
    %785 = vmatpush1.msra.mxu0 %v784
    %786 = vmatprep.subr.mxu0 0.0
    %v787 = vand.u32 %v130, 4294901760
    %788 = vmatpush1.msra.mxu0 %v787
    %789 = vmatprep.subr.mxu0 0.0
    %v790 = vand.u32 %v131, 4294901760
    %791 = vmatpush1.msra.mxu0 %v790
    %792 = vmatprep.subr.mxu0 0.0
    %v793 = vand.u32 %v132, 4294901760
    %794 = vmatpush1.msra.mxu0 %v793
    %795 = vmatprep.subr.mxu0 0.0
    %v796 = vand.u32 %v133, 4294901760
    %797 = vmatpush1.msra.mxu0 %v796
    %798 = vmatprep.subr.mxu0 0.0
    %v799 = vand.u32 %v134, 4294901760
    %800 = vmatpush1.msra.mxu0 %v799
    %801 = vmatprep.subr.mxu0 0.0
    %802 = vmatpush1.msra.mxu0 0.0
    %803 = vmatprep.subr.mxu0 0.0
    %804 = vmatpush1.msra.mxu0 0.0
    %805 = vmatprep.subr.mxu0 0.0
    %806 = vmatpush1.msra.mxu0 0.0
    %807 = vmatprep.subr.mxu0 0.0
    %808 = vmatpush1.msra.mxu0 0.0
    %809 = vmatprep.subr.mxu0 0.0
    %810 = vmatpush1.msra.mxu0 0.0
    %811 = vmatprep.subr.mxu0 0.0
    %812 = vmatpush1.msra.mxu0 0.0
    %813 = vmatprep.subr.mxu0 0.0
    %814 = vmatpush1.msra.mxu0 0.0
    %815 = vmatprep.subr.mxu0 0.0
    %816 = vmatpush1.msra.mxu0 0.0
    %817 = vmatprep.subr.mxu0 0.0
    %818 = vmatpush1.msra.mxu0 0.0
    %819 = vmatprep.subr.mxu0 0.0
    %820 = vmatpush1.msra.mxu0 0.0
    %821 = vmatprep.subr.mxu0 0.0
    %822 = vmatpush1.msra.mxu0 0.0
    %823 = vmatprep.subr.mxu0 0.0
    %824 = vmatpush1.msra.mxu0 0.0
    %825 = vmatprep.subr.mxu0 0.0
    %826 = vmatpush1.msra.mxu0 0.0
    %827 = vmatprep.subr.mxu0 0.0
    %828 = vmatpush1.msra.mxu0 0.0
    %829 = vmatprep.subr.mxu0 0.0
    %830 = vmatpush1.msra.mxu0 0.0
    %831 = vmatprep.subr.mxu0 0.0
    %832 = vmatpush1.msra.mxu0 0.0
    %833 = vmatprep.subr.mxu0 0.0
    %834 = vmatpush1.msra.mxu0 0.0
    %835 = vmatprep.subr.mxu0 0.0
    %836 = vmatpush1.msra.mxu0 0.0
    %837 = vmatprep.subr.mxu0 0.0
    %838 = vmatpush1.msra.mxu0 0.0
    %839 = vmatprep.subr.mxu0 0.0
    %840 = vmatpush1.msra.mxu0 0.0
    %841 = vmatprep.mubr.f32.mxu0 0.0
    %v842 = vand.u32 %v137, 4294901760
    %843 = vmatmul.mubr.f32.gmra.mrb[0].mxu0 %v842
    %v844 = vpop.f32.mrb[0].mxu0
    %v845 = vadd.f32 %v744, %v844
    %v846 = vpop.f32.mrb[0].mxu0
    %847 = vmatprep.mubr.f32.mxu0 0.0
    %v848 = vand.u32 %v140, 4294901760
    %849 = vmatmul.mubr.f32.gmra.mrb[0].mxu0 %v848
    %v850 = vpop.f32.mrb[0].mxu0
    %v851 = vadd.f32 %v750, %v850
    %v852 = vpop.f32.mrb[0].mxu0
    %853 = vmatprep.mubr.f32.mxu0 0.0
    %v854 = vand.u32 %v143, 4294901760
    %855 = vmatmul.mubr.f32.gmra.mrb[0].mxu0 %v854
    %v856 = vpop.f32.mrb[0].mxu0
    %v857 = vadd.f32 %v756, %v856
    %v858 = vpop.f32.mrb[0].mxu0
    %859 = vmatprep.mubr.f32.mxu0 0.0
    %v860 = vand.u32 %v146, 4294901760
    %861 = vmatmul.mubr.f32.gmra.mrb[0].mxu0 %v860
    %v862 = vpop.f32.mrb[0].mxu0
    %v863 = vadd.f32 %v762, %v862
    %v864 = vpop.f32.mrb[0].mxu0
    %865 = vdwg.mxu0
    %866 = vadd.xlane.f32.xlu0 %v845
    %v867 = vpop.xlane.xlu0 %866
    %868 = vadd.xlane.f32.xlu0 %v851
    %v869 = vpop.xlane.xlu0 %868
    %870 = vadd.xlane.f32.xlu0 %v857
    %v871 = vpop.xlane.xlu0 %870
    %872 = vadd.xlane.f32.xlu0 %v863
    %v873 = vpop.xlane.xlu0 %872
    %v874 = vrcp.pop 128.0
    %v875 = vmul.f32 %v867, %v874
    %v876 = vmul.f32 %v869, %v874
    %v877 = vmul.f32 %v871, %v874
    %v878 = vmul.f32 %v873, %v874
    %v879 = vsub.f32 %v845, %v875
    %v880 = vsub.f32 %v851, %v876
    %v881 = vsub.f32 %v857, %v877
    %v882 = vsub.f32 %v863, %v878
    %v883 = vmul.f32 %v879, %v879
    %v884 = vmul.f32 %v880, %v880
    %v885 = vmul.f32 %v881, %v881
    %v886 = vmul.f32 %v882, %v882
    %887 = vadd.xlane.f32.xlu0 %v883
    %v888 = vpop.xlane.xlu0 %887
    %889 = vadd.xlane.f32.xlu0 %v884
    %v890 = vpop.xlane.xlu0 %889
    %891 = vadd.xlane.f32.xlu0 %v885
    %v892 = vpop.xlane.xlu0 %891
    %893 = vadd.xlane.f32.xlu0 %v886
    %v894 = vpop.xlane.xlu0 %893
    %v895 = vmul.f32 %v888, %v874
    %v896 = vmul.f32 %v890, %v874
    %v897 = vmul.f32 %v892, %v874
    %v898 = vmul.f32 %v894, %v874
    %v899 = vadd.f32 %v895, 1e-12
    %v900 = vadd.f32 %v896, 1e-12
    %v901 = vadd.f32 %v897, 1e-12
    %v902 = vadd.f32 %v898, 1e-12
    %v903 = vrsqrt.pop %v899
    %v904 = vrsqrt.pop %v900
    %v905 = vrsqrt.pop %v901
    %v906 = vrsqrt.pop %v902
    %v907 = vld [vmem:[%s4] sm:$0x1]
    %v908 = vld [vmem:[%s4 + $0x1] sm:$0x1]
    %v909 = vmul.f32 %v879, %v903
    %v910 = vmul.f32 %v880, %v904
    %v911 = vmul.f32 %v881, %v905
    %v912 = vmul.f32 %v882, %v906
    %v913 = vlaneseq
    %v914 = vshrl.u32 %v913, 7
    %v915 = vsub.s32 0, %v914
    %v916 = vrot.slane %v907, %v915
    %v917 = vmul.f32 %v909, %v916
    %v918 = vmul.f32 %v910, %v916
    %v919 = vmul.f32 %v911, %v916
    %v920 = vmul.f32 %v912, %v916
    %v921 = vlaneseq
    %v922 = vshrl.u32 %v921, 7
    %v923 = vsub.s32 0, %v922
    %v924 = vrot.slane %v908, %v923
    %v925 = vadd.f32 %v917, %v924
    %v926 = vadd.f32 %v918, %v924
    %v927 = vadd.f32 %v919, %v924
    %v928 = vadd.f32 %v920, %v924
    %929 = vst [vmem:[#allocation2] sm:$0xff] %v925
    %930 = vst [vmem:[#allocation2 + $0x8] sm:$0xff] %v926
    %931 = vst [vmem:[#allocation2 + $0x10] sm:$0xff] %v927
    %932 = vst [vmem:[#allocation2 + $0x18] sm:$0xff] %v928
    // Predicated region
    $region22: #{edge_encoding.1} parent=1 // pred_check
      _
    $region23: #{edge_encoding.1} parent=1 // pred_check_branch
      %934 = sbr.rel (0) target = $region25
    $region24: #{edge_encoding.1} parent=1 // pred_region
      %s936 = ssub.s32 512, 512
      %937 = vsyncadd [#allocation3], %s936
      %s938 = sshll.u32 [#allocation2], 4
      %s939 = int_to_ptr.vmem [resolvable:$true] %s938
      %944 = dma.vmem_to_hbm [thread:$0]  %s939, 512, %s5, [#allocation3], 128, 128, 8
    $region25: #{edge_encoding.1} parent=1 // pred_fallthru
      _
    // Predicated region
    $region26: #{edge_encoding.1} parent=1 // pred_check
      _
    $region27: #{edge_encoding.1} parent=1 // pred_check_branch
      %946 = sbr.rel (0) target = $region29
    $region28: #{edge_encoding.1} parent=1 // pred_region
      %947 = dma.done [#allocation3], 512
    $region29: #{edge_encoding.1} parent=1 // pred_fallthru
      _
    %948 = vsyncpa [#allocation3], 1

</llo_original>
